<compile_context>
chip_gen: v5e
topology: v5e:2x2
jax: 0.10.0
libtpu: 0.0.40
codegen_flags: <defaults>
</compile_context>

<pallas_src>
import jax
import jax.numpy as jnp
from jax.experimental import pallas as pl
from jax.experimental.pallas import tpu as pltpu

_LANE = 128        # vreg lane width
_SUBLANE_BF16 = 16 # bf16 sublane tile (safe for f32 too: multiple of 8)


def _round_up(x, m):
    return ((x + m - 1) // m) * m


def _pad2d(a, rows, cols):
    pr, pc = rows - a.shape[0], cols - a.shape[1]
    if pr == 0 and pc == 0:
        return a
    return jnp.pad(a, ((0, pr), (0, pc)))


def _mlp_policy_kernel(max_action):
    """Fused 3-layer MLP actor on one batch tile:
       relu(x@W1+b1) -> relu(.@W2+b2) -> max_action * tanh(.@W3+b3).
       bf16 MXU inputs, f32 accumulation; bias/ReLU/tanh/scale in f32 (VPU/EUP),
       hidden activations stored once in bf16."""

    def kernel(x_ref, w1_ref, b1_ref, w2_ref, b2_ref, w3_ref, b3_ref, out_ref):
        # layer 1: Linear + ReLU   (x is already bf16; f32 accumulate)
        h1 = jnp.dot(x_ref[...], w1_ref[...], preferred_element_type=jnp.float32)
        h1 = jnp.maximum(h1 + b1_ref[...], 0.0).astype(jnp.bfloat16)

        # layer 2: Linear + ReLU
        h2 = jnp.dot(h1, w2_ref[...], preferred_element_type=jnp.float32)
        h2 = jnp.maximum(h2 + b2_ref[...], 0.0).astype(jnp.bfloat16)

        # output layer: Linear (N = action_dim, unpadded), then max_action * tanh
        a = jnp.dot(h2, w3_ref[...], preferred_element_type=jnp.float32)
        out_ref[...] = (max_action * jnp.tanh(a + b3_ref[...])).astype(out_ref.dtype)

    return kernel


def prepare_params(params):
    """One-time preparation of the actor weights: pad hidden dims to 128 lanes,
    cast weights to bf16 (MXU-native), keep biases f32. Cache the result and
    reuse it across forward calls."""
    w1, w2, w3 = params["w1"], params["w2"], params["w3"]
    b1, b2, b3 = params["b1"], params["b2"], params["b3"]
    in_dim, h1_dim = w1.shape
    h2_dim, action_dim = w3.shape
    h1_p = _round_up(h1_dim, _LANE)
    h2_p = _round_up(h2_dim, _LANE)
    # Zero-padding is exact: zero weight rows/cols + zero biases contribute
    # nothing downstream (relu(0)=0).
    return {
        "w1": _pad2d(w1, in_dim, h1_p).astype(jnp.bfloat16),
        "b1": _pad2d(b1.reshape(1, -1).astype(jnp.float32), 1, h1_p),
        "w2": _pad2d(w2, h1_p, h2_p).astype(jnp.bfloat16),
        "b2": _pad2d(b2.reshape(1, -1).astype(jnp.float32), 1, h2_p),
        "w3": _pad2d(w3, h2_p, action_dim).astype(jnp.bfloat16),  # out dim unpadded
        "b3": b3.reshape(1, -1).astype(jnp.float32),
    }


def _choose_batch_tile(B, tm_max):
    """Minimize batch padding; keep >= 2 grid steps (v7x megacore) when B allows."""
    n_tiles = max(pl.cdiv(B, tm_max), 1)
    if B >= 2 * _SUBLANE_BF16:
        n_tiles = max(n_tiles, 2)
    tm = _round_up(pl.cdiv(B, n_tiles), _SUBLANE_BF16)
    b_p = _round_up(B, tm)
    return tm, b_p


def mlp_policy_forward(state, prepared, max_action, *, tm_max=4096):
    """state: (B, in_dim) float; prepared: output of prepare_params (bf16 weights)."""
    w1, b1 = prepared["w1"], prepared["b1"]
    w2, b2 = prepared["w2"], prepared["b2"]
    w3, b3 = prepared["w3"], prepared["b3"]

    B, in_dim = state.shape
    assert w1.shape[0] == in_dim
    h1_p, h2_p = w1.shape[1], w2.shape[1]
    action_dim = w3.shape[1]

    tm, b_p = _choose_batch_tile(B, tm_max)
    grid = (b_p // tm,)

    # bf16 state: the kernel math was already bf16, so this halves input DMA
    # bytes with no change to the computation actually performed.
    x_p = _pad2d(state.astype(jnp.bfloat16), b_p, in_dim)

    resident = lambda i: (0, 0)   # same block index every step -> stays in VMEM
    in_specs = [
        pl.BlockSpec((tm, in_dim), lambda i: (i, 0)),    # state tile (pipelined)
        pl.BlockSpec((in_dim, h1_p), resident),
        pl.BlockSpec((1, h1_p), resident),
        pl.BlockSpec((h1_p, h2_p), resident),
        pl.BlockSpec((1, h2_p), resident),
        pl.BlockSpec((h2_p, action_dim), resident),
        pl.BlockSpec((1, action_dim), resident),
    ]
    out_specs = pl.BlockSpec((tm, action_dim), lambda i: (i, 0))

    # VMEM budget: double-buffered activation tiles + (double-buffered) resident
    # weights + bf16/f32 intermediates + headroom; cap under v7x's 64 MiB.
    act_bytes = 2 * tm * in_dim * 2 + 2 * tm * action_dim * 4
    wgt_bytes = 2 * ((in_dim * h1_p + h1_p * h2_p + h2_p * action_dim) * 2
                     + (h1_p + h2_p + action_dim) * 4)
    interm_bytes = tm * (h1_p + h2_p) * (4 + 2) + tm * action_dim * 4
    vmem_limit = min(int(1.5 * (act_bytes + wgt_bytes + interm_bytes)) + (4 << 20),
                     64 << 20)

    flops = 2 * b_p * (in_dim * h1_p + h1_p * h2_p + h2_p * action_dim)
    bytes_accessed = (b_p * in_dim * 2                              # bf16 state
                      + (w1.size + w2.size + w3.size) * 2           # bf16 weights
                      + (h1_p + h2_p + action_dim) * 4              # f32 biases
                      + b_p * action_dim * 4)                       # f32 output
    cost = pl.CostEstimate(flops=flops,
                           transcendentals=b_p * action_dim,
                           bytes_accessed=bytes_accessed)

    out = pl.pallas_call(
        _mlp_policy_kernel(float(max_action)),
        out_shape=jax.ShapeDtypeStruct((b_p, action_dim), jnp.float32),
        grid=grid,
        in_specs=in_specs,
        out_specs=out_specs,
        compiler_params=pltpu.CompilerParams(
            dimension_semantics=("parallel",),
            vmem_limit_bytes=vmem_limit),
        cost_estimate=cost,
    )(x_p, w1, b1, w2, b2, w3, b3)

    # Slice off batch padding only (feature dims are already exact).
    return out[:B]


def init_params(key, in_dim, hidden_dims, action_dim):
    """Deterministic synthetic init (PyTorch nn.Linear-style uniform fan-in bounds)."""
    dims = [in_dim] + list(hidden_dims) + [action_dim]
    params = {}
    keys = jax.random.split(key, 2 * (len(dims) - 1))
    for i in range(len(dims) - 1):
        fan_in = dims[i]
        bound = 1.0 / (fan_in ** 0.5)
        w = jax.random.uniform(keys[2 * i], (dims[i], dims[i + 1]),
                               minval=-bound, maxval=bound, dtype=jnp.float32)
        b = jax.random.uniform(keys[2 * i + 1], (1, dims[i + 1]),
                               minval=-bound, maxval=bound, dtype=jnp.float32)
        params[f"w{i + 1}"] = w
        params[f"b{i + 1}"] = b
    return params


def reference_forward(state, params, max_action):
    h1 = jnp.maximum(state @ params["w1"] + params["b1"], 0.0)
    h2 = jnp.maximum(h1 @ params["w2"] + params["b2"], 0.0)
    a = h2 @ params["w3"] + params["b3"]
    return max_action * jnp.tanh(a)


if __name__ == "__main__":
    # Small shapes consistent with the module:
    #   state_dim = 4 per limb, num_limbs = 4  -> actor input dim = 16
    #   hidden_dims = [32, 32], action_dim = 8, batch = 2, max_action = 1.0
    state_dim = 4
    num_limbs = 4
    in_dim = state_dim * num_limbs
    hidden_dims = (32, 32)
    action_dim = 8
    batch = 2
    max_action = 1.0

    key = jax.random.PRNGKey(0)
    k_state, k_params = jax.random.split(key)

    state = jax.random.normal(k_state, (batch, in_dim), dtype=jnp.float32)
    params = init_params(k_params, in_dim, hidden_dims, action_dim)

    prepared = jax.tree_util.tree_map(jax.block_until_ready, prepare_params(params))

    action = jax.block_until_ready(mlp_policy_forward(state, prepared, max_action))

    # sanity check against pure-JAX f32 reference (kernel uses bf16 MXU inputs
    # with f32 accumulation -> small, bounded deviation; tanh output is in [-1,1])
    ref = reference_forward(state, params, max_action)
    assert action.shape == (batch, action_dim)
    max_err = float(jnp.max(jnp.abs(action - ref)))
    assert jnp.allclose(action, ref, atol=5e-2, rtol=5e-2), max_err

    print("KERNEL_OK")
</pallas_src>

<mosaic_0001>
module attributes {stable_mosaic.version = 11 : i64} {
  func.func @kernel(%arg0: i32, %arg1: memref<16x16xbf16, #tpu.memory_space<vmem>>, %arg2: memref<16x128xbf16, #tpu.memory_space<vmem>>, %arg3: memref<1x128xf32, #tpu.memory_space<vmem>>, %arg4: memref<128x128xbf16, #tpu.memory_space<vmem>>, %arg5: memref<1x128xf32, #tpu.memory_space<vmem>>, %arg6: memref<128x8xbf16, #tpu.memory_space<vmem>>, %arg7: memref<1x8xf32, #tpu.memory_space<vmem>>, %arg8: memref<16x8xf32, #tpu.memory_space<vmem>>) attributes {dimension_semantics = [#tpu.dimension_semantics<parallel>], iteration_bounds = array<i64: 1>, scalar_prefetch = 0 : i64, scratch_operands = 0 : i64, tpu.core_type = #tpu.core_type<tc>, window_params = [{transform_indices = @transform_0, window_bounds = array<i64: 16, 16>}, {pipeline_mode = #tpu.pipeline_mode<synchronous>, transform_indices = @transform_1, window_bounds = array<i64: 16, 128>}, {pipeline_mode = #tpu.pipeline_mode<synchronous>, transform_indices = @transform_2, window_bounds = array<i64: 1, 128>}, {pipeline_mode = #tpu.pipeline_mode<synchronous>, transform_indices = @transform_3, window_bounds = array<i64: 128, 128>}, {pipeline_mode = #tpu.pipeline_mode<synchronous>, transform_indices = @transform_4, window_bounds = array<i64: 1, 128>}, {pipeline_mode = #tpu.pipeline_mode<synchronous>, transform_indices = @transform_5, window_bounds = array<i64: 128, 8>}, {pipeline_mode = #tpu.pipeline_mode<synchronous>, transform_indices = @transform_6, window_bounds = array<i64: 1, 8>}, {transform_indices = @transform_7, window_bounds = array<i64: 16, 8>}]} {
    %c0 = arith.constant 0 : index
    %c0_0 = arith.constant 0 : index
    %0 = vector.load %arg1[%c0, %c0_0] : memref<16x16xbf16, #tpu.memory_space<vmem>>, vector<16x16xbf16>
    %c0_1 = arith.constant 0 : index
    %c0_2 = arith.constant 0 : index
    %1 = vector.load %arg2[%c0_1, %c0_2] : memref<16x128xbf16, #tpu.memory_space<vmem>>, vector<16x128xbf16>
    %cst = arith.constant dense<0.000000e+00> : vector<16x128xf32>
    %2 = tpu.matmul %0, %1, %cst {dimension_numbers = #tpu.dot_dimension_numbers<[1], [0], [0], [1], [0, 0, 1, 1], [], []>} : vector<16x16xbf16>, vector<16x128xbf16>, vector<16x128xf32> -> vector<16x128xf32>
    %c0_3 = arith.constant 0 : index
    %c0_4 = arith.constant 0 : index
    %3 = vector.load %arg3[%c0_3, %c0_4] : memref<1x128xf32, #tpu.memory_space<vmem>>, vector<1x128xf32>
    %4 = vector.broadcast %3 : vector<1x128xf32> to vector<16x128xf32>
    %5 = arith.addf %2, %4 : vector<16x128xf32>
    %cst_5 = arith.constant 0.000000e+00 : f32
    %6 = vector.broadcast %cst_5 : f32 to vector<16x128xf32>
    %7 = arith.maximumf %5, %6 : vector<16x128xf32>
    %8 = arith.truncf %7 : vector<16x128xf32> to vector<16x128xbf16>
    %c0_6 = arith.constant 0 : index
    %c0_7 = arith.constant 0 : index
    %9 = vector.load %arg4[%c0_6, %c0_7] : memref<128x128xbf16, #tpu.memory_space<vmem>>, vector<128x128xbf16>
    %cst_8 = arith.constant dense<0.000000e+00> : vector<16x128xf32>
    %10 = tpu.matmul %8, %9, %cst_8 {dimension_numbers = #tpu.dot_dimension_numbers<[1], [0], [0], [1], [0, 0, 1, 1], [], []>} : vector<16x128xbf16>, vector<128x128xbf16>, vector<16x128xf32> -> vector<16x128xf32>
    %c0_9 = arith.constant 0 : index
    %c0_10 = arith.constant 0 : index
    %11 = vector.load %arg5[%c0_9, %c0_10] : memref<1x128xf32, #tpu.memory_space<vmem>>, vector<1x128xf32>
    %12 = vector.broadcast %11 : vector<1x128xf32> to vector<16x128xf32>
    %13 = arith.addf %10, %12 : vector<16x128xf32>
    %cst_11 = arith.constant 0.000000e+00 : f32
    %14 = vector.broadcast %cst_11 : f32 to vector<16x128xf32>
    %15 = arith.maximumf %13, %14 : vector<16x128xf32>
    %16 = arith.truncf %15 : vector<16x128xf32> to vector<16x128xbf16>
    %c0_12 = arith.constant 0 : index
    %c0_13 = arith.constant 0 : index
    %17 = vector.load %arg6[%c0_12, %c0_13] : memref<128x8xbf16, #tpu.memory_space<vmem>>, vector<128x8xbf16>
    %cst_14 = arith.constant dense<0.000000e+00> : vector<16x8xf32>
    %18 = tpu.matmul %16, %17, %cst_14 {dimension_numbers = #tpu.dot_dimension_numbers<[1], [0], [0], [1], [0, 0, 1, 1], [], []>} : vector<16x128xbf16>, vector<128x8xbf16>, vector<16x8xf32> -> vector<16x8xf32>
    %c0_15 = arith.constant 0 : index
    %c0_16 = arith.constant 0 : index
    %19 = vector.load %arg7[%c0_15, %c0_16] : memref<1x8xf32, #tpu.memory_space<vmem>>, vector<1x8xf32>
    %20 = vector.broadcast %19 : vector<1x8xf32> to vector<16x8xf32>
    %21 = arith.addf %18, %20 : vector<16x8xf32>
    %22 = math.tanh %21 : vector<16x8xf32>
    %cst_17 = arith.constant 1.000000e+00 : f32
    %23 = vector.broadcast %cst_17 : f32 to vector<16x8xf32>
    %24 = arith.mulf %23, %22 : vector<16x8xf32>
    %c0_18 = arith.constant 0 : index
    %c0_19 = arith.constant 0 : index
    %25 = vector.load %arg8[%c0_18, %c0_19] : memref<16x8xf32, #tpu.memory_space<vmem>>, vector<16x8xf32>
    tpu.vector_store %arg8[%c0_18, %c0_19], %24 {strides = array<i32>} : memref<16x8xf32, #tpu.memory_space<vmem>>, vector<16x8xf32>,
    return
  }
  func.func @transform_0(%arg0: i32) -> (i32, i32) {
    %c0_i32 = arith.constant 0 : i32
    %c0_i32_0 = arith.constant 0 : i32
    return %arg0, %c0_i32 : i32, i32
  }
  func.func @transform_1(%arg0: i32) -> (i32, i32) {
    %c0_i32 = arith.constant 0 : i32
    %c0_i32_0 = arith.constant 0 : i32
    %c0_i32_1 = arith.constant 0 : i32
    return %c0_i32, %c0_i32_0 : i32, i32
  }
  func.func @transform_2(%arg0: i32) -> (i32, i32) {
    %c0_i32 = arith.constant 0 : i32
    %c0_i32_0 = arith.constant 0 : i32
    %c0_i32_1 = arith.constant 0 : i32
    return %c0_i32, %c0_i32_0 : i32, i32
  }
  func.func @transform_3(%arg0: i32) -> (i32, i32) {
    %c0_i32 = arith.constant 0 : i32
    %c0_i32_0 = arith.constant 0 : i32
    %c0_i32_1 = arith.constant 0 : i32
    return %c0_i32, %c0_i32_0 : i32, i32
  }
  func.func @transform_4(%arg0: i32) -> (i32, i32) {
    %c0_i32 = arith.constant 0 : i32
    %c0_i32_0 = arith.constant 0 : i32
    %c0_i32_1 = arith.constant 0 : i32
    return %c0_i32, %c0_i32_0 : i32, i32
  }
  func.func @transform_5(%arg0: i32) -> (i32, i32) {
    %c0_i32 = arith.constant 0 : i32
    %c0_i32_0 = arith.constant 0 : i32
    %c0_i32_1 = arith.constant 0 : i32
    return %c0_i32, %c0_i32_0 : i32, i32
  }
  func.func @transform_6(%arg0: i32) -> (i32, i32) {
    %c0_i32 = arith.constant 0 : i32
    %c0_i32_0 = arith.constant 0 : i32
    %c0_i32_1 = arith.constant 0 : i32
    return %c0_i32, %c0_i32_0 : i32, i32
  }
  func.func @transform_7(%arg0: i32) -> (i32, i32) {
    %c0_i32 = arith.constant 0 : i32
    %c0_i32_0 = arith.constant 0 : i32
    return %arg0, %c0_i32 : i32, i32
  }
}

</mosaic_0001>

<llo_original>
// kernel: tpu_custom_call.1
$region0: #{tpu_custom_call.1}
  #allocation0 [shape = 'u32[]', space=smem, size = 0x4, offset = 0x4, fixed_abs, tag = 'smem constant byte address 0x4 - core index']
  #allocation1 [shape = 'u32[72,128]{1,0:T(1,128)}', space=vmem, size = 0x9000, scoped, tag = 'internal scratch']
  %s0 = inlined_call_operand.hbm [shape: bf16[16,16], index: 0, kind: input, shape index: {}]
  %s1 = inlined_call_operand.hbm [shape: bf16[16,128], index: 1, kind: input, shape index: {}]
  %s2 = inlined_call_operand.vmem [shape: f32[1,128], index: 2, kind: input, shape index: {}]
  %s3 = inlined_call_operand.vmem [shape: bf16[128,128], index: 3, kind: input, shape index: {}]
  %s4 = inlined_call_operand.vmem [shape: f32[1,128], index: 4, kind: input, shape index: {}]
  %s5 = inlined_call_operand.vmem [shape: bf16[128,8], index: 5, kind: input, shape index: {}]
  %s6 = inlined_call_operand.vmem [shape: f32[1,8], index: 6, kind: input, shape index: {}]
  %s7 = inlined_call_operand.vmem [shape: f32[16,8], index: 7, kind: output, shape index: {}]
  %s8 = sld [smem:[#allocation0]]
  $region46: #{tpu_custom_call.1} parent=0
    _
  %s10 = ssub.s32 1, %s8
  %s11 = scalar_select 0, %s10, %s8
  $region1: #{tpu_custom_call.1} parent=0
    #allocation2 [shape = 'u8[4096]{0}', space=vmem, size = 0x1000, scoped, tag = 'input window, operand 0, single buffered']
    #allocation3 [shape = 's32[1]{0}', space=sflag, size = 0x4, scoped, tag = 'scoped memory for tpu_custom_call.1']
    #allocation4 [shape = 'u8[4096]{0}', space=vmem, size = 0x1000, scoped, tag = 'input window, operand 1, single buffered']
    #allocation5 [shape = 's32[1]{0}', space=sflag, size = 0x4, scoped, tag = 'scoped memory for tpu_custom_call.1']
    %12 = vsyncpa [#allocation3], 0
    %13 = vsyncpa [#allocation5], 0
    // Predicated region
    $region2: #{tpu_custom_call.1} parent=1 // pred_check
      _
    $region3: #{tpu_custom_call.1} parent=1 // pred_check_branch
      %15 = sbr.rel (0) target = $region5
    $region4: #{tpu_custom_call.1} parent=1 // pred_region
      %17 = vsyncadd [#allocation3], 0
      %s18 = sshll.u32 %s0, 4
      %s19 = int_to_ptr.hbm [resolvable:$true] %s18
      %s20 = sshll.u32 [#allocation2], 4
      %s21 = int_to_ptr.vmem [resolvable:$true] %s20
      %26 = dma.hbm_to_vmem [thread:$0]  %s19, 128, %s21, [#allocation3], 64, 64, 4
    $region5: #{tpu_custom_call.1} parent=1 // pred_fallthru
      _
    // Predicated region
    $region6: #{tpu_custom_call.1} parent=1 // pred_check
      _
    $region7: #{tpu_custom_call.1} parent=1 // pred_check_branch
      %28 = sbr.rel (0) target = $region9
    $region8: #{tpu_custom_call.1} parent=1 // pred_region
      %30 = vsyncadd [#allocation5], 0
      %s31 = sshll.u32 %s1, 4
      %s32 = int_to_ptr.hbm [resolvable:$true] %s31
      %s33 = sshll.u32 [#allocation4], 4
      %s34 = int_to_ptr.vmem [resolvable:$true] %s33
      %39 = dma.hbm_to_vmem [thread:$0]  %s32, 128, %s34, [#allocation5], 64, 64, 4
    $region9: #{tpu_custom_call.1} parent=1 // pred_fallthru
      _
    // Predicated region
    $region10: #{tpu_custom_call.1} parent=1 // pred_check
      _
    $region11: #{tpu_custom_call.1} parent=1 // pred_check_branch
      %41 = sbr.rel (0) target = $region13
    $region12: #{tpu_custom_call.1} parent=1 // pred_region
      _
    $region13: #{tpu_custom_call.1} parent=1 // pred_fallthru
      _
    // Predicated region
    $region14: #{tpu_custom_call.1} parent=1 // pred_check
      _
    $region15: #{tpu_custom_call.1} parent=1 // pred_check_branch
      %43 = sbr.rel (0) target = $region17
    $region16: #{tpu_custom_call.1} parent=1 // pred_region
      _
    $region17: #{tpu_custom_call.1} parent=1 // pred_fallthru
      _
    // Predicated region
    $region18: #{tpu_custom_call.1} parent=1 // pred_check
      _
    $region19: #{tpu_custom_call.1} parent=1 // pred_check_branch
      %45 = sbr.rel (0) target = $region21
    $region20: #{tpu_custom_call.1} parent=1 // pred_region
      _
    $region21: #{tpu_custom_call.1} parent=1 // pred_fallthru
      _
    // Predicated region
    $region22: #{tpu_custom_call.1} parent=1 // pred_check
      _
    $region23: #{tpu_custom_call.1} parent=1 // pred_check_branch
      %47 = sbr.rel (0) target = $region25
    $region24: #{tpu_custom_call.1} parent=1 // pred_region
      _
    $region25: #{tpu_custom_call.1} parent=1 // pred_fallthru
      _
    // Predicated region
    $region26: #{tpu_custom_call.1} parent=1 // pred_check
      _
    $region27: #{tpu_custom_call.1} parent=1 // pred_check_branch
      %49 = sbr.rel (0) target = $region29
    $region28: #{tpu_custom_call.1} parent=1 // pred_region
      _
    $region29: #{tpu_custom_call.1} parent=1 // pred_fallthru
      _
    // Predicated region
    $region30: #{tpu_custom_call.1} parent=1 // pred_check
      _
    $region31: #{tpu_custom_call.1} parent=1 // pred_check_branch
      %51 = sbr.rel (0) target = $region33
    $region32: #{tpu_custom_call.1} parent=1 // pred_region
      %53 = dma.done [#allocation3], 128
    $region33: #{tpu_custom_call.1} parent=1 // pred_fallthru
      _
    // Predicated region
    $region34: #{tpu_custom_call.1} parent=1 // pred_check
      _
    $region35: #{tpu_custom_call.1} parent=1 // pred_check_branch
      %55 = sbr.rel (0) target = $region37
    $region36: #{tpu_custom_call.1} parent=1 // pred_region
      %57 = dma.done [#allocation5], 128
    $region37: #{tpu_custom_call.1} parent=1 // pred_fallthru
      _
    %v59 = vld [vmem:[#allocation2] sm:$0xf]
    %v60 = vld [vmem:[#allocation2 + $0x4] sm:$0xf]
    %v61 = vld [vmem:[#allocation4] sm:$0xf]
    %v62 = vld [vmem:[#allocation4 + $0x4] sm:$0xf]
    %v63 = vld [vmem:[%s2] sm:$0x1]
    %v65 = vperm.slane %v63, 0
    %v69 = vunpack.c.l.b16 %v59
    %v70 = vunpack.c.l.b16 %v60
    %v71 = vpack.c.b16 %v70, %v69
    %v74 = vunpack.c.l.b16 %v61
    %v75 = vunpack.c.l.b16 %v62
    %v76 = vpack.c.b16 %v75, %v74
    %vm78 = vcmask 130048
    %v80 = vsel %vm78, %v71, 0
    %82 = vmatpush.bf16.msra.mxu0 0
    %83 = vmatpush.bf16.msra.mxu0 0
    %84 = vmatpush.bf16.msra.mxu0 0
    %85 = vmatpush.bf16.msra.mxu0 0
    %86 = vmatpush.bf16.msra.mxu0 0
    %87 = vmatpush.bf16.msra.mxu0 0
    %88 = vmatpush.bf16.msra.mxu0 0
    %89 = vmatpush.bf16.msra.mxu0 %v76
    %90 = vmatmul.bf16.gmra.mxu0 %v80
    %v91 = vpop.f32.mrf.mxu0
    %v92 = vadd.f32 %v65, %v91
    %v93 = vpop.f32.mrf.mxu0
    %v94 = vadd.f32 %v65, %v93
    %95 = vdwg.mxu0
    %v96 = vmax.f32 %v92, 0.0
    %v97 = vmax.f32 %v94, 0.0
    %v98 = vpack.c.bf16 %v97, %v96
    %v99 = vld [vmem:[%s3] sm:$0xf]
    %v100 = vld [vmem:[%s3 + $0x4] sm:$0xf]
    %v101 = vld [vmem:[%s3 + $0x8] sm:$0xf]
    %v102 = vld [vmem:[%s3 + $0xc] sm:$0xf]
    %v103 = vld [vmem:[%s3 + $0x10] sm:$0xf]
    %v104 = vld [vmem:[%s3 + $0x14] sm:$0xf]
    %v105 = vld [vmem:[%s3 + $0x18] sm:$0xf]
    %v106 = vld [vmem:[%s3 + $0x1c] sm:$0xf]
    %v107 = vld [vmem:[%s3 + $0x20] sm:$0xf]
    %v108 = vld [vmem:[%s3 + $0x24] sm:$0xf]
    %v109 = vld [vmem:[%s3 + $0x28] sm:$0xf]
    %v110 = vld [vmem:[%s3 + $0x2c] sm:$0xf]
    %v111 = vld [vmem:[%s3 + $0x30] sm:$0xf]
    %v112 = vld [vmem:[%s3 + $0x34] sm:$0xf]
    %v113 = vld [vmem:[%s3 + $0x38] sm:$0xf]
    %v114 = vld [vmem:[%s3 + $0x3c] sm:$0xf]
    %v115 = vld [vmem:[%s4] sm:$0x1]
    %v117 = vperm.slane %v115, 0
    %v135 = vunpack.c.l.b16 %v99
    %v136 = vunpack.c.l.b16 %v100
    %v137 = vunpack.c.l.b16 %v101
    %v138 = vunpack.c.l.b16 %v102
    %v139 = vunpack.c.l.b16 %v103
    %v140 = vunpack.c.l.b16 %v104
    %v141 = vunpack.c.l.b16 %v105
    %v142 = vunpack.c.l.b16 %v106
    %v143 = vunpack.c.l.b16 %v107
    %v144 = vunpack.c.l.b16 %v108
    %v145 = vunpack.c.l.b16 %v109
    %v146 = vunpack.c.l.b16 %v110
    %v147 = vunpack.c.l.b16 %v111
    %v148 = vunpack.c.l.b16 %v112
    %v149 = vunpack.c.l.b16 %v113
    %v150 = vunpack.c.l.b16 %v114
    %v151 = vpack.c.b16 %v136, %v135
    %v152 = vpack.c.b16 %v138, %v137
    %v153 = vpack.c.b16 %v140, %v139
    %v154 = vpack.c.b16 %v142, %v141
    %v155 = vpack.c.b16 %v144, %v143
    %v156 = vpack.c.b16 %v146, %v145
    %v157 = vpack.c.b16 %v148, %v147
    %v158 = vpack.c.b16 %v150, %v149
    %167 = vmatpush.bf16.msra.mxu0 %v158
    %168 = vmatpush.bf16.msra.mxu0 %v157
    %169 = vmatpush.bf16.msra.mxu0 %v156
    %170 = vmatpush.bf16.msra.mxu0 %v155
    %171 = vmatpush.bf16.msra.mxu0 %v154
    %172 = vmatpush.bf16.msra.mxu0 %v153
    %173 = vmatpush.bf16.msra.mxu0 %v152
    %174 = vmatpush.bf16.msra.mxu0 %v151
    %175 = vmatmul.bf16.gmra.mxu0 %v98
    %v176 = vpop.f32.mrf.mxu0
    %v177 = vadd.f32 %v117, %v176
    %v178 = vpop.f32.mrf.mxu0
    %v179 = vadd.f32 %v117, %v178
    %180 = vdwg.mxu0
    %v181 = vmax.f32 %v177, 0.0
    %v182 = vmax.f32 %v179, 0.0
    %v183 = vpack.c.bf16 %v182, %v181
    %v184 = vld [vmem:[%s5] sm:$0xf]
    %v185 = vld [vmem:[%s5 + $0x4] sm:$0xf]
    %v186 = vld [vmem:[%s5 + $0x8] sm:$0xf]
    %v187 = vld [vmem:[%s5 + $0xc] sm:$0xf]
    %v188 = vld [vmem:[%s5 + $0x10] sm:$0xf]
    %v189 = vld [vmem:[%s5 + $0x14] sm:$0xf]
    %v190 = vld [vmem:[%s5 + $0x18] sm:$0xf]
    %v191 = vld [vmem:[%s5 + $0x1c] sm:$0xf]
    %v192 = vld [vmem:[%s5 + $0x20] sm:$0xf]
    %v193 = vld [vmem:[%s5 + $0x24] sm:$0xf]
    %v194 = vld [vmem:[%s5 + $0x28] sm:$0xf]
    %v195 = vld [vmem:[%s5 + $0x2c] sm:$0xf]
    %v196 = vld [vmem:[%s5 + $0x30] sm:$0xf]
    %v197 = vld [vmem:[%s5 + $0x34] sm:$0xf]
    %v198 = vld [vmem:[%s5 + $0x38] sm:$0xf]
    %v199 = vld [vmem:[%s5 + $0x3c] sm:$0xf]
    %v200 = vld [vmem:[%s6] sm:$0x1]
    %v202 = vperm.slane %v200, 0
    %v220 = vunpack.c.l.b16 %v184
    %v221 = vunpack.c.l.b16 %v185
    %v222 = vunpack.c.l.b16 %v186
    %v223 = vunpack.c.l.b16 %v187
    %v224 = vunpack.c.l.b16 %v188
    %v225 = vunpack.c.l.b16 %v189
    %v226 = vunpack.c.l.b16 %v190
    %v227 = vunpack.c.l.b16 %v191
    %v228 = vunpack.c.l.b16 %v192
    %v229 = vunpack.c.l.b16 %v193
    %v230 = vunpack.c.l.b16 %v194
    %v231 = vunpack.c.l.b16 %v195
    %v232 = vunpack.c.l.b16 %v196
    %v233 = vunpack.c.l.b16 %v197
    %v234 = vunpack.c.l.b16 %v198
    %v235 = vunpack.c.l.b16 %v199
    %v236 = vpack.c.b16 %v221, %v220
    %v237 = vpack.c.b16 %v223, %v222
    %v238 = vpack.c.b16 %v225, %v224
    %v239 = vpack.c.b16 %v227, %v226
    %v240 = vpack.c.b16 %v229, %v228
    %v241 = vpack.c.b16 %v231, %v230
    %v242 = vpack.c.b16 %v233, %v232
    %v243 = vpack.c.b16 %v235, %v234
    %252 = vmatpush.bf16.msra.mxu0 %v243
    %253 = vmatpush.bf16.msra.mxu0 %v242
    %254 = vmatpush.bf16.msra.mxu0 %v241
    %255 = vmatpush.bf16.msra.mxu0 %v240
    %256 = vmatpush.bf16.msra.mxu0 %v239
    %257 = vmatpush.bf16.msra.mxu0 %v238
    %258 = vmatpush.bf16.msra.mxu0 %v237
    %259 = vmatpush.bf16.msra.mxu0 %v236
    %260 = vmatmul.bf16.gmra.mxu0 %v183
    %v261 = vpop.f32.mrf.mxu0
    %v262 = vadd.f32 %v202, %v261
    %v263 = vpop.f32.mrf.mxu0
    %v264 = vadd.f32 %v202, %v263
    %265 = vdwg.mxu0
    %v266 = vtanh.pop %v262
    %v267 = vtanh.pop %v264
    %vm268 = vcmask 64512
    %269 = vst.msk [vmem:[%s7] sm:$0xff] %vm268, %v266
    %270 = vst.msk [vmem:[%s7 + $0x8] sm:$0xff] %vm268, %v267
    // Predicated region
    $region38: #{tpu_custom_call.1} parent=1 // pred_check
      _
    $region39: #{tpu_custom_call.1} parent=1 // pred_check_branch
      %272 = sbr.rel (0) target = $region41
    $region40: #{tpu_custom_call.1} parent=1 // pred_region
      _
    $region41: #{tpu_custom_call.1} parent=1 // pred_fallthru
      _
    // Predicated region
    $region42: #{tpu_custom_call.1} parent=1 // pred_check
      _
    $region43: #{tpu_custom_call.1} parent=1 // pred_check_branch
      %274 = sbr.rel (0) target = $region45
    $region44: #{tpu_custom_call.1} parent=1 // pred_region
      _
    $region45: #{tpu_custom_call.1} parent=1 // pred_fallthru
      _
    %275 = vsyncpa [#allocation3], 1
    %276 = vsyncpa [#allocation5], 1

</llo_original>
